<compile_context>
chip_gen: v7x
topology: tpu7x:2x2x1
jax: 0.10.0
libtpu: 0.0.40
codegen_flags: <defaults>
</compile_context>

<pallas_src>
import jax
import jax.numpy as jnp
from jax.experimental import pallas as pl
from jax.experimental.pallas import tpu as pltpu

_LANE = 128
_WIDTH_CANDIDATES = (4096, 2048, 1024, 512, 256, 128)   # lane-dense widths
_TARGET_TILE_BYTES = 4 * 1024 * 1024     # ~4 MiB tile -> ~16 MiB pipelined VMEM
_VMEM_LIMIT_BYTES = 32 * 1024 * 1024     # fits v5e/v6e (128 MiB) and v7x (64 MiB/TC)
_MIN_PALLAS_BYTES = 512 * 1024           # below this, fused XLA op wins (launch overhead)
_DUAL_CORE_MIN_BYTES = 2 * 1024 * 1024   # above this, force >= 2 grid blocks (v7x 2 TCs)


def _round_up(a, m):
    return ((a + m - 1) // m) * m


def _affine_kernel(params_ref, x_ref, o_ref):
    """y = scale * x + shift.  params_ref is a (2,) f32 SMEM ref [scale, shift]."""
    # bf16 computes natively (v6e/v7x bf16 VALU; Mosaic widens on v5e); else f32.
    compute_dt = jnp.bfloat16 if x_ref.dtype == jnp.bfloat16 else jnp.float32
    scale = params_ref[0].astype(compute_dt)
    shift = params_ref[1].astype(compute_dt)
    y = x_ref[...].astype(compute_dt) * scale + shift
    if jnp.issubdtype(o_ref.dtype, jnp.integer):
        y = jnp.rint(y)                       # round (don't truncate) for int outputs
    o_ref[...] = y.astype(o_ref.dtype)


def _affine_jnp(x, scale, shift):
    """Fused-XLA fallback: tiny tensors / element counts not divisible by 128."""
    compute_dt = jnp.bfloat16 if x.dtype == jnp.bfloat16 else jnp.float32
    y = (x.astype(compute_dt) * jnp.asarray(scale, compute_dt)
         + jnp.asarray(shift, compute_dt))
    if jnp.issubdtype(x.dtype, jnp.integer):
        y = jnp.rint(y)
    return y.astype(x.dtype)


def affine_augment(x, *, scale=1.0, shift=0.0):
    """Elementwise augment_fn: y = scale * x + shift (Pallas TPU on the hot path)."""
    orig_shape = x.shape
    dtype = x.dtype
    n = x.size
    itemsize = jnp.dtype(dtype).itemsize
    total_bytes = n * itemsize

    # Tiny tensors: pallas_call dispatch + per-step overhead dominates; one fused
    # XLA elementwise op is already at the HBM roofline.  Same fallback for the
    # rare n % 128 != 0 case, avoiding any pad/concat/slice extra HBM passes.
    if total_bytes < _MIN_PALLAS_BYTES or n % _LANE != 0:
        return _affine_jnp(x, scale, shift)

    # Widest lane-dense width dividing n: zero-copy (rows, width) slab.
    width = _LANE
    for cand in _WIDTH_CANDIDATES:
        if n % cand == 0:
            width = cand
            break
    rows = n // width
    x2d = x.reshape(rows, width)

    # Sublane packing per dtype: 8 rows (f32), 16 (bf16/f16), 32 (int8/fp8).
    sub = max(8, 32 // itemsize)
    row_bytes = width * itemsize
    tile_rows = max(sub, (_TARGET_TILE_BYTES // row_bytes) // sub * sub)

    if rows <= tile_rows and total_bytes < _DUAL_CORE_MIN_BYTES:
        block_rows = rows                     # single block, dims == full array dims
    else:
        block_rows = tile_rows
        if total_bytes >= _DUAL_CORE_MIN_BYTES:
            # Guarantee >= 2 grid blocks so v7x's two TensorCores both stream
            # data and consecutive-step read/write DMA overlaps.
            half_rows = max(sub, _round_up(pl.cdiv(rows, 2), sub))
            block_rows = min(block_rows, half_rows)
        block_rows = min(block_rows, rows)

    grid = (pl.cdiv(rows, block_rows),)

    # scale/shift as runtime SMEM data -> no Mosaic recompile per value pair.
    params = jnp.stack([jnp.asarray(scale, jnp.float32).reshape(()),
                        jnp.asarray(shift, jnp.float32).reshape(())])

    out2d = pl.pallas_call(
        _affine_kernel,
        out_shape=jax.ShapeDtypeStruct((rows, width), dtype),
        grid=grid,
        in_specs=[
            pl.BlockSpec(memory_space=pltpu.MemorySpace.SMEM),    # (2,) scalar params
            pl.BlockSpec((block_rows, width), lambda i: (i, 0)),  # input slab
        ],
        out_specs=pl.BlockSpec((block_rows, width), lambda i: (i, 0)),
        compiler_params=pltpu.CompilerParams(
            dimension_semantics=("parallel",),
            vmem_limit_bytes=_VMEM_LIMIT_BYTES,
        ),
        # TODO(synk): add input_output_aliases={1: 0} once callers donate the
        # input buffer (halves peak HBM footprint; HBM traffic is unchanged).
    )(params, x2d)

    return out2d.reshape(orig_shape)


class BaseTransform:
    """
    JAX/Pallas port of rising's BaseTransform.

    Applies `augment_fn` to the array stored under every key in `keys` and
    returns the (shallow-copied) data dict.  `grad` is a no-op here (JAX
    autodiff is controlled by the caller, not a torch context manager).
    kwargs are deterministic values forwarded to augment_fn.
    """

    def __init__(self, *, augment_fn, keys=("data",), grad=False,
                 per_sample=True, **kwargs):
        self.augment_fn = augment_fn
        assert isinstance(keys, (tuple, list)), keys
        self.keys = tuple(keys)
        self.grad = grad
        self.per_sample = per_sample
        self.kwargs = kwargs
        # TODO(synk): AbstractParameter random samplers / register_sampler /
        # register_paired_attribute and per_sample batch-wise resampling have
        # no Pallas equivalent here; kwargs are fixed values shared by all keys.

    def __call__(self, **data):
        return self.forward(**data)

    def forward(self, **data) -> dict:
        out = dict(data)
        for key in self.keys:
            out[key] = self.augment_fn(out[key], **self.kwargs)
        return out


if __name__ == "__main__":
    rng = jax.random.PRNGKey(0)
    k1, k2, k3, k4 = jax.random.split(rng, 4)

    # Small NCHW tensors (fused-jnp bypass path).
    data = jax.random.normal(k1, (2, 4, 16, 16), dtype=jnp.float32)
    seg = jax.random.normal(k2, (2, 4, 16, 16), dtype=jnp.float32)
    # Larger NCHW volume (2 MiB): hits the Pallas kernel with a 2-block grid.
    vol = jax.random.normal(k3, (2, 4, 256, 256), dtype=jnp.float32)

    tfm = BaseTransform(
        augment_fn=affine_augment,
        keys=("data", "seg", "vol"),
        per_sample=True,
        scale=1.5,
        shift=-0.25,
    )
    out = tfm(data=data, seg=seg, vol=vol)
    for k in ("data", "seg", "vol"):
        jax.block_until_ready(out[k])

    for name, arr in (("data", data), ("seg", seg), ("vol", vol)):
        ref = arr * 1.5 - 0.25
        assert out[name].shape == arr.shape and out[name].dtype == arr.dtype
        assert jnp.allclose(out[name], ref, atol=1e-5), name

    # bf16 path: computed natively in bf16 inside the Pallas kernel.
    xb = jax.random.normal(k4, (2, 4, 256, 256), dtype=jnp.bfloat16)  # 1 MiB
    yb = affine_augment(xb, scale=0.5, shift=2.0)
    jax.block_until_ready(yb)
    ref_b = (xb.astype(jnp.float32) * 0.5 + 2.0)
    assert yb.dtype == jnp.bfloat16 and yb.shape == xb.shape
    assert jnp.allclose(yb.astype(jnp.float32), ref_b, atol=5e-2)

    print("KERNEL_OK")
</pallas_src>

<mosaic_0001>
module attributes {stable_mosaic.version = 11 : i64} {
  func.func @_affine_kernel(%arg0: i32, %arg1: memref<2xf32, #tpu.memory_space<smem>>, %arg2: memref<64x4096xf32, #tpu.memory_space<vmem>>, %arg3: memref<64x4096xf32, #tpu.memory_space<vmem>>) attributes {dimension_semantics = [#tpu.dimension_semantics<parallel>], iteration_bounds = array<i64: 2>, scalar_prefetch = 0 : i64, scratch_operands = 0 : i64, tpu.core_type = #tpu.core_type<tc>, window_params = [{transform_indices = @transform_0, window_bounds = array<i64: 2>}, {transform_indices = @transform_1, window_bounds = array<i64: 64, 4096>}, {transform_indices = @transform_2, window_bounds = array<i64: 64, 4096>}]} {
    %c0 = arith.constant 0 : index
    %0 = memref.load %arg1[%c0] : memref<2xf32, #tpu.memory_space<smem>>
    %c1 = arith.constant 1 : index
    %1 = memref.load %arg1[%c1] : memref<2xf32, #tpu.memory_space<smem>>
    %c0_0 = arith.constant 0 : index
    %c0_1 = arith.constant 0 : index
    %2 = vector.load %arg2[%c0_0, %c0_1] : memref<64x4096xf32, #tpu.memory_space<vmem>>, vector<64x4096xf32>
    %3 = vector.broadcast %0 : f32 to vector<64x4096xf32>
    %4 = arith.mulf %2, %3 : vector<64x4096xf32>
    %5 = vector.broadcast %1 : f32 to vector<64x4096xf32>
    %6 = arith.addf %4, %5 : vector<64x4096xf32>
    %c0_2 = arith.constant 0 : index
    %c0_3 = arith.constant 0 : index
    %7 = vector.load %arg3[%c0_2, %c0_3] : memref<64x4096xf32, #tpu.memory_space<vmem>>, vector<64x4096xf32>
    tpu.vector_store %arg3[%c0_2, %c0_3], %6 {strides = array<i32>} : memref<64x4096xf32, #tpu.memory_space<vmem>>, vector<64x4096xf32>,
    return
  }
  func.func @transform_0(%arg0: i32) -> i32 {
    %c0_i32 = arith.constant 0 : i32
    %c0_i32_0 = arith.constant 0 : i32
    return %c0_i32 : i32
  }
  func.func @transform_1(%arg0: i32) -> (i32, i32) {
    %c0_i32 = arith.constant 0 : i32
    %c0_i32_0 = arith.constant 0 : i32
    return %arg0, %c0_i32 : i32, i32
  }
  func.func @transform_2(%arg0: i32) -> (i32, i32) {
    %c0_i32 = arith.constant 0 : i32
    %c0_i32_0 = arith.constant 0 : i32
    return %arg0, %c0_i32 : i32, i32
  }
}

</mosaic_0001>

<llo_original>
// kernel: tpu_custom_call.1
$region0: #{tpu_custom_call.1}
  #allocation0 [shape = 'u32[]', space=smem, size = 0x4, offset = 0x4, fixed_abs, tag = 'smem constant byte address 0x4 - core index']
  #allocation1 [shape = 'u32[144,128]{1,0:T(1,128)}', space=vmem, size = 0x12000, scoped, tag = 'internal scratch']
  %s0 = inlined_call_operand.hbm [shape: f32[2], index: 0, kind: input, shape index: {}]
  %s1 = inlined_call_operand.hbm [shape: f32[128,4096], index: 1, kind: input, shape index: {}]
  %s2 = inlined_call_operand.hbm [shape: f32[128,4096], index: 2, kind: output, shape index: {}]
  %s3 = sld [smem:[#allocation0]]
  $region49: #{tpu_custom_call.1} parent=0
    _
  %s5 = ssub.s32 1, %s3
  %s6 = scalar_select 0, %s5, %s3
  $region1: #{tpu_custom_call.1} parent=0
    #allocation2 [shape = 'u8[512]{0}', space=smem, size = 0x200, scoped, tag = 'input window, operand 0, single buffered']
    #allocation3 [shape = 's32[2]{0}', space=sflag, size = 0x8, scoped, tag = 'scoped memory for tpu_custom_call.1']
    #allocation4 [shape = 's32[2]{0}', space=sflag, size = 0x8, scoped, tag = 'scoped memory for tpu_custom_call.1']
    #allocation5 [shape = 's32[2]{0}', space=sflag, size = 0x8, scoped, tag = 'scoped memory for tpu_custom_call.1']
    #allocation6 [shape = 'u8[2097152]{0}', space=vmem, size = 0x200000, scoped, tag = 'input window, operand 1']
    #allocation7 [shape = 'u8[2097152]{0}', space=vmem, size = 0x200000, scoped, tag = 'output window, operand 0']
    %7 = vsyncpa [#allocation5], 0
    %8 = vsyncpa [#allocation3], 0
    %s9 = scalar_lea.sflag [#allocation3], 1
    %10 = vsyncpa %s9, 0
    %11 = vsyncpa [#allocation4], 0
    %s12 = scalar_lea.sflag [#allocation4], 1
    %13 = vsyncpa %s12, 0
    loop: start=0, step=1, limit=4
    $region2: #{tpu_custom_call.1} parent=1 // loop_pre_header
      _
    $region3: #{tpu_custom_call.1} parent=1 // loop_header
      %s15 = sphi 0, %s19
      %p16 = scmp.ge.s32.totalorder %s15, 4
      %s23 = sphi 0, %s23
      %s25 = sphi 0, %s23
      %s26 = sphi 0, %s25
      %s40 = sphi 0, %s26
      %s46 = sphi 0, %s48
      %s49 = sphi 0, %s46
      %s50 = sphi 0, %s49
      %s66 = sphi 0, %s50
      %s72 = sphi 0, %s74
      %s75 = sphi 0, %s72
      %s76 = sphi 0, %s75
      %s92 = sphi 0, %s76
    $region4: #{tpu_custom_call.1} parent=1 // loop_header_branch
      %18 = sbr.rel (%p16) target = $region8
    $region5: #{tpu_custom_call.1} parent=1 // loop_body
      %s20 = ssub.s32 %s15, 1
      %s21 = ssub.s32 %s15, 2
      %s22 = sadd.s32 %s15, 1
      %s24 = sadd.s32 %s23, 1
      %p27 = scmp.eq.s32.totalorder %s15, 1
      %p28 = scmp.ne.s32.totalorder %s23, %s25
      %p29 = scmp.eq.s32.totalorder %s15, 0
      %p30 = por %p28, %p29
      %p31 = scmp.ne.s32.totalorder %s23, %s25
      %p32 = scmp.eq.s32.totalorder %s20, 1
      %p33 = por %p31, %p32
      %p34 = scmp.ne.s32.totalorder %s25, %s26
      %p35 = scmp.eq.s32.totalorder %s20, 0
      %p36 = por %p34, %p35
      %p37 = scmp.ne.s32.totalorder %s25, %s26
      %p38 = scmp.eq.s32.totalorder %s21, 1
      %p39 = por %p37, %p38
      %p41 = scmp.ne.s32.totalorder %s26, %s40
      %p42 = scmp.eq.s32.totalorder %s21, 0
      %p43 = por %p41, %p42
      %s44 = ssub.s32 %s15, %s22
      %p45 = scmp.eq.s32.totalorder %s44, 0
      %s47 = sadd.s32 %s46, 1
      %s48 = scalar_select %p45, %s46, %s47
      %p51 = pneg %p45
      %p52 = scmp.eq.s32.totalorder %s15, 1
      %p53 = por %p51, %p52
      %p54 = scmp.ne.s32.totalorder %s46, %s49
      %p55 = scmp.eq.s32.totalorder %s15, 0
      %p56 = por %p54, %p55
      %p57 = scmp.ne.s32.totalorder %s46, %s49
      %p58 = scmp.eq.s32.totalorder %s20, 1
      %p59 = por %p57, %p58
      %p60 = scmp.ne.s32.totalorder %s49, %s50
      %p61 = scmp.eq.s32.totalorder %s20, 0
      %p62 = por %p60, %p61
      %p63 = scmp.ne.s32.totalorder %s49, %s50
      %p64 = scmp.eq.s32.totalorder %s21, 1
      %p65 = por %p63, %p64
      %p67 = scmp.ne.s32.totalorder %s50, %s66
      %p68 = scmp.eq.s32.totalorder %s21, 0
      %p69 = por %p67, %p68
      %s70 = ssub.s32 %s15, %s22
      %p71 = scmp.eq.s32.totalorder %s70, 0
      %s73 = sadd.s32 %s72, 1
      %s74 = scalar_select %p71, %s72, %s73
      %p77 = pneg %p71
      %p78 = scmp.eq.s32.totalorder %s15, 1
      %p79 = por %p77, %p78
      %p80 = scmp.ne.s32.totalorder %s72, %s75
      %p81 = scmp.eq.s32.totalorder %s15, 0
      %p82 = por %p80, %p81
      %p83 = scmp.ne.s32.totalorder %s72, %s75
      %p84 = scmp.eq.s32.totalorder %s20, 1
      %p85 = por %p83, %p84
      %p86 = scmp.ne.s32.totalorder %s75, %s76
      %p87 = scmp.eq.s32.totalorder %s20, 0
      %p88 = por %p86, %p87
      %p89 = scmp.ne.s32.totalorder %s75, %s76
      %p90 = scmp.eq.s32.totalorder %s21, 1
      %p91 = por %p89, %p90
      %p93 = scmp.ne.s32.totalorder %s76, %s92
      %p94 = scmp.eq.s32.totalorder %s21, 0
      %p95 = por %p93, %p94
      %p96 = scmp.le.s32.totalorder 1, %s15
      %p97 = scmp.lt.s32.totalorder %s15, 3
      %p98 = pnand %p96, %p97
      %p99 = pneg %p98
      // Predicated region
      $region9: #{tpu_custom_call.1} parent=5 // pred_check
        _
      $region10: #{tpu_custom_call.1} parent=5 // pred_check_branch
        %101 = sbr.rel (%p98) target = $region12
      $region11: #{tpu_custom_call.1} parent=5 // pred_region
        %s102 = ssub.s32 %s15, 1
        // Predicated region
        $region13: #{tpu_custom_call.1} parent=11 // pred_check
          %p103 = pneg %p36
        $region14: #{tpu_custom_call.1} parent=11 // pred_check_branch
          %105 = sbr.rel (%p103) target = $region16
        $region15: #{tpu_custom_call.1} parent=11 // pred_region
          %s107 = ssub.s32 16, 16
          %108 = vsyncadd [#allocation5], %s107
          %111 = dma.hbm_to_smem %s0, 16, [#allocation2], [#allocation5]
        $region16: #{tpu_custom_call.1} parent=11 // pred_fallthru
          _
      $region12: #{tpu_custom_call.1} parent=5 // pred_fallthru
        _
      %p112 = scmp.lt.s32.totalorder %s15, 2
      // Predicated region
      $region17: #{tpu_custom_call.1} parent=5 // pred_check
        %p113 = pneg %p112
      $region18: #{tpu_custom_call.1} parent=5 // pred_check_branch
        %115 = sbr.rel (%p113) target = $region20
      $region19: #{tpu_custom_call.1} parent=5 // pred_region
        // Predicated region
        $region21: #{tpu_custom_call.1} parent=19 // pred_check
          %p116 = pneg %p56
        $region22: #{tpu_custom_call.1} parent=19 // pred_check_branch
          %118 = sbr.rel (%p116) target = $region24
        $region23: #{tpu_custom_call.1} parent=19 // pred_region
          %s119 = sand.u32 %s46, 1
          %s120 = scalar_lea.sflag [#allocation3], %s119
          %s121 = sand.u32 %s46, 1
          %s122 = smul.addr %s121, 2048
          %s123 = scalar_lea.vmem [#allocation6], %s122
          %s124 = smul.u32 8, %s15
          %s126 = ssub.s32 32768, 32768
          %127 = vsyncadd %s120, %s126
          %s128 = smul.addr %s124, 32
          %s129 = smul.addr %s128, 128
          %s130 = scalar_lea.hbm %s1, %s129
          %s131 = sshll.u32 %s123, 4
          %s132 = int_to_ptr.vmem [resolvable:$true] %s131
          %137 = dma.hbm_to_vmem [thread:$0]  %s130, 32768, %s132, %s120, 4096, 4096, 256
        $region24: #{tpu_custom_call.1} parent=19 // pred_fallthru
          _
      $region20: #{tpu_custom_call.1} parent=5 // pred_fallthru
        _
      %p138 = scmp.le.s32.totalorder 1, %s15
      %p139 = scmp.lt.s32.totalorder %s15, 3
      %p140 = pnand %p138, %p139
      %p141 = pneg %p140
      // Predicated region
      $region25: #{tpu_custom_call.1} parent=5 // pred_check
        _
      $region26: #{tpu_custom_call.1} parent=5 // pred_check_branch
        %143 = sbr.rel (%p140) target = $region28
      $region27: #{tpu_custom_call.1} parent=5 // pred_region
        %s144 = ssub.s32 %s15, 1
        // Predicated region
        $region29: #{tpu_custom_call.1} parent=27 // pred_check
          %p145 = pneg %p36
        $region30: #{tpu_custom_call.1} parent=27 // pred_check_branch
          %147 = sbr.rel (%p145) target = $region32
        $region31: #{tpu_custom_call.1} parent=27 // pred_region
          %148 = dma.done [#allocation5], 16
        $region32: #{tpu_custom_call.1} parent=27 // pred_fallthru
          _
        %s149 = sand.u32 %s49, 1
        %s150 = scalar_lea.sflag [#allocation3], %s149
        %s151 = sand.u32 %s49, 1
        %s152 = smul.addr %s151, 2048
        %s153 = scalar_lea.vmem [#allocation6], %s152
        // Predicated region
        $region33: #{tpu_custom_call.1} parent=27 // pred_check
          %p154 = pneg %p62
        $region34: #{tpu_custom_call.1} parent=27 // pred_check_branch
          %156 = sbr.rel (%p154) target = $region36
        $region35: #{tpu_custom_call.1} parent=27 // pred_region
          %157 = dma.done %s150, 32768
        $region36: #{tpu_custom_call.1} parent=27 // pred_fallthru
          _
        %158 = sfence
        %p159 = pneg %p36
        %p160 = pneg %p33
        %s161 = sand.u32 %s49, 1
        %s162 = scalar_lea.sflag [#allocation3], %s161
        %s163 = sand.u32 %s49, 1
        %s164 = smul.addr %s163, 2048
        %s165 = scalar_lea.vmem [#allocation6], %s164
        %p166 = pneg %p62
        %p167 = pneg %p59
        %p168 = pneg %p88
        %p169 = pneg %p85
        %s170 = sand.u32 %s75, 1
        %s171 = scalar_lea.sflag [#allocation4], %s170
        %s172 = sand.u32 %s75, 1
        %s173 = smul.addr %s172, 2048
        %s174 = scalar_lea.vmem [#allocation7], %s173
        %s175 = smul.u32 8, %s20
        %s176 = smul.u32 8, %s20
        %s177 = sld [smem:[#allocation2]]
        %s178 = sld [smem:[#allocation2 + $0x1]]
        %v179 = vld [vmem:[%s153] sm:$0xff]
        %v180 = vld [vmem:[%s153 + $0x8] sm:$0xff]
        %v181 = vld [vmem:[%s153 + $0x10] sm:$0xff]
        %v182 = vld [vmem:[%s153 + $0x18] sm:$0xff]
        %v183 = vld [vmem:[%s153 + $0x20] sm:$0xff]
        %v184 = vld [vmem:[%s153 + $0x28] sm:$0xff]
        %v185 = vld [vmem:[%s153 + $0x30] sm:$0xff]
        %v186 = vld [vmem:[%s153 + $0x38] sm:$0xff]
        %v187 = vld [vmem:[%s153 + $0x40] sm:$0xff]
        %v188 = vld [vmem:[%s153 + $0x48] sm:$0xff]
        %v189 = vld [vmem:[%s153 + $0x50] sm:$0xff]
        %v190 = vld [vmem:[%s153 + $0x58] sm:$0xff]
        %v191 = vld [vmem:[%s153 + $0x60] sm:$0xff]
        %v192 = vld [vmem:[%s153 + $0x68] sm:$0xff]
        %v193 = vld [vmem:[%s153 + $0x70] sm:$0xff]
        %v194 = vld [vmem:[%s153 + $0x78] sm:$0xff]
        %v195 = vld [vmem:[%s153 + $0x80] sm:$0xff]
        %v196 = vld [vmem:[%s153 + $0x88] sm:$0xff]
        %v197 = vld [vmem:[%s153 + $0x90] sm:$0xff]
        %v198 = vld [vmem:[%s153 + $0x98] sm:$0xff]
        %v199 = vld [vmem:[%s153 + $0xa0] sm:$0xff]
        %v200 = vld [vmem:[%s153 + $0xa8] sm:$0xff]
        %v201 = vld [vmem:[%s153 + $0xb0] sm:$0xff]
        %v202 = vld [vmem:[%s153 + $0xb8] sm:$0xff]
        %v203 = vld [vmem:[%s153 + $0xc0] sm:$0xff]
        %v204 = vld [vmem:[%s153 + $0xc8] sm:$0xff]
        %v205 = vld [vmem:[%s153 + $0xd0] sm:$0xff]
        %v206 = vld [vmem:[%s153 + $0xd8] sm:$0xff]
        %v207 = vld [vmem:[%s153 + $0xe0] sm:$0xff]
        %v208 = vld [vmem:[%s153 + $0xe8] sm:$0xff]
        %v209 = vld [vmem:[%s153 + $0xf0] sm:$0xff]
        %v210 = vld [vmem:[%s153 + $0xf8] sm:$0xff]
        %v211 = vld [vmem:[%s153 + $0x100] sm:$0xff]
        %v212 = vld [vmem:[%s153 + $0x108] sm:$0xff]
        %v213 = vld [vmem:[%s153 + $0x110] sm:$0xff]
        %v214 = vld [vmem:[%s153 + $0x118] sm:$0xff]
        %v215 = vld [vmem:[%s153 + $0x120] sm:$0xff]
        %v216 = vld [vmem:[%s153 + $0x128] sm:$0xff]
        %v217 = vld [vmem:[%s153 + $0x130] sm:$0xff]
        %v218 = vld [vmem:[%s153 + $0x138] sm:$0xff]
        %v219 = vld [vmem:[%s153 + $0x140] sm:$0xff]
        %v220 = vld [vmem:[%s153 + $0x148] sm:$0xff]
        %v221 = vld [vmem:[%s153 + $0x150] sm:$0xff]
        %v222 = vld [vmem:[%s153 + $0x158] sm:$0xff]
        %v223 = vld [vmem:[%s153 + $0x160] sm:$0xff]
        %v224 = vld [vmem:[%s153 + $0x168] sm:$0xff]
        %v225 = vld [vmem:[%s153 + $0x170] sm:$0xff]
        %v226 = vld [vmem:[%s153 + $0x178] sm:$0xff]
        %v227 = vld [vmem:[%s153 + $0x180] sm:$0xff]
        %v228 = vld [vmem:[%s153 + $0x188] sm:$0xff]
        %v229 = vld [vmem:[%s153 + $0x190] sm:$0xff]
        %v230 = vld [vmem:[%s153 + $0x198] sm:$0xff]
        %v231 = vld [vmem:[%s153 + $0x1a0] sm:$0xff]
        %v232 = vld [vmem:[%s153 + $0x1a8] sm:$0xff]
        %v233 = vld [vmem:[%s153 + $0x1b0] sm:$0xff]
        %v234 = vld [vmem:[%s153 + $0x1b8] sm:$0xff]
        %v235 = vld [vmem:[%s153 + $0x1c0] sm:$0xff]
        %v236 = vld [vmem:[%s153 + $0x1c8] sm:$0xff]
        %v237 = vld [vmem:[%s153 + $0x1d0] sm:$0xff]
        %v238 = vld [vmem:[%s153 + $0x1d8] sm:$0xff]
        %v239 = vld [vmem:[%s153 + $0x1e0] sm:$0xff]
        %v240 = vld [vmem:[%s153 + $0x1e8] sm:$0xff]
        %v241 = vld [vmem:[%s153 + $0x1f0] sm:$0xff]
        %v242 = vld [vmem:[%s153 + $0x1f8] sm:$0xff]
        %v243 = vld [vmem:[%s153 + $0x200] sm:$0xff]
        %v244 = vld [vmem:[%s153 + $0x208] sm:$0xff]
        %v245 = vld [vmem:[%s153 + $0x210] sm:$0xff]
        %v246 = vld [vmem:[%s153 + $0x218] sm:$0xff]
        %v247 = vld [vmem:[%s153 + $0x220] sm:$0xff]
        %v248 = vld [vmem:[%s153 + $0x228] sm:$0xff]
        %v249 = vld [vmem:[%s153 + $0x230] sm:$0xff]
        %v250 = vld [vmem:[%s153 + $0x238] sm:$0xff]
        %v251 = vld [vmem:[%s153 + $0x240] sm:$0xff]
        %v252 = vld [vmem:[%s153 + $0x248] sm:$0xff]
        %v253 = vld [vmem:[%s153 + $0x250] sm:$0xff]
        %v254 = vld [vmem:[%s153 + $0x258] sm:$0xff]
        %v255 = vld [vmem:[%s153 + $0x260] sm:$0xff]
        %v256 = vld [vmem:[%s153 + $0x268] sm:$0xff]
        %v257 = vld [vmem:[%s153 + $0x270] sm:$0xff]
        %v258 = vld [vmem:[%s153 + $0x278] sm:$0xff]
        %v259 = vld [vmem:[%s153 + $0x280] sm:$0xff]
        %v260 = vld [vmem:[%s153 + $0x288] sm:$0xff]
        %v261 = vld [vmem:[%s153 + $0x290] sm:$0xff]
        %v262 = vld [vmem:[%s153 + $0x298] sm:$0xff]
        %v263 = vld [vmem:[%s153 + $0x2a0] sm:$0xff]
        %v264 = vld [vmem:[%s153 + $0x2a8] sm:$0xff]
        %v265 = vld [vmem:[%s153 + $0x2b0] sm:$0xff]
        %v266 = vld [vmem:[%s153 + $0x2b8] sm:$0xff]
        %v267 = vld [vmem:[%s153 + $0x2c0] sm:$0xff]
        %v268 = vld [vmem:[%s153 + $0x2c8] sm:$0xff]
        %v269 = vld [vmem:[%s153 + $0x2d0] sm:$0xff]
        %v270 = vld [vmem:[%s153 + $0x2d8] sm:$0xff]
        %v271 = vld [vmem:[%s153 + $0x2e0] sm:$0xff]
        %v272 = vld [vmem:[%s153 + $0x2e8] sm:$0xff]
        %v273 = vld [vmem:[%s153 + $0x2f0] sm:$0xff]
        %v274 = vld [vmem:[%s153 + $0x2f8] sm:$0xff]
        %v275 = vld [vmem:[%s153 + $0x300] sm:$0xff]
        %v276 = vld [vmem:[%s153 + $0x308] sm:$0xff]
        %v277 = vld [vmem:[%s153 + $0x310] sm:$0xff]
        %v278 = vld [vmem:[%s153 + $0x318] sm:$0xff]
        %v279 = vld [vmem:[%s153 + $0x320] sm:$0xff]
        %v280 = vld [vmem:[%s153 + $0x328] sm:$0xff]
        %v281 = vld [vmem:[%s153 + $0x330] sm:$0xff]
        %v282 = vld [vmem:[%s153 + $0x338] sm:$0xff]
        %v283 = vld [vmem:[%s153 + $0x340] sm:$0xff]
        %v284 = vld [vmem:[%s153 + $0x348] sm:$0xff]
        %v285 = vld [vmem:[%s153 + $0x350] sm:$0xff]
        %v286 = vld [vmem:[%s153 + $0x358] sm:$0xff]
        %v287 = vld [vmem:[%s153 + $0x360] sm:$0xff]
        %v288 = vld [vmem:[%s153 + $0x368] sm:$0xff]
        %v289 = vld [vmem:[%s153 + $0x370] sm:$0xff]
        %v290 = vld [vmem:[%s153 + $0x378] sm:$0xff]
        %v291 = vld [vmem:[%s153 + $0x380] sm:$0xff]
        %v292 = vld [vmem:[%s153 + $0x388] sm:$0xff]
        %v293 = vld [vmem:[%s153 + $0x390] sm:$0xff]
        %v294 = vld [vmem:[%s153 + $0x398] sm:$0xff]
        %v295 = vld [vmem:[%s153 + $0x3a0] sm:$0xff]
        %v296 = vld [vmem:[%s153 + $0x3a8] sm:$0xff]
        %v297 = vld [vmem:[%s153 + $0x3b0] sm:$0xff]
        %v298 = vld [vmem:[%s153 + $0x3b8] sm:$0xff]
        %v299 = vld [vmem:[%s153 + $0x3c0] sm:$0xff]
        %v300 = vld [vmem:[%s153 + $0x3c8] sm:$0xff]
        %v301 = vld [vmem:[%s153 + $0x3d0] sm:$0xff]
        %v302 = vld [vmem:[%s153 + $0x3d8] sm:$0xff]
        %v303 = vld [vmem:[%s153 + $0x3e0] sm:$0xff]
        %v304 = vld [vmem:[%s153 + $0x3e8] sm:$0xff]
        %v305 = vld [vmem:[%s153 + $0x3f0] sm:$0xff]
        %v306 = vld [vmem:[%s153 + $0x3f8] sm:$0xff]
        %v307 = vld [vmem:[%s153 + $0x400] sm:$0xff]
        %v308 = vld [vmem:[%s153 + $0x408] sm:$0xff]
        %v309 = vld [vmem:[%s153 + $0x410] sm:$0xff]
        %v310 = vld [vmem:[%s153 + $0x418] sm:$0xff]
        %v311 = vld [vmem:[%s153 + $0x420] sm:$0xff]
        %v312 = vld [vmem:[%s153 + $0x428] sm:$0xff]
        %v313 = vld [vmem:[%s153 + $0x430] sm:$0xff]
        %v314 = vld [vmem:[%s153 + $0x438] sm:$0xff]
        %v315 = vld [vmem:[%s153 + $0x440] sm:$0xff]
        %v316 = vld [vmem:[%s153 + $0x448] sm:$0xff]
        %v317 = vld [vmem:[%s153 + $0x450] sm:$0xff]
        %v318 = vld [vmem:[%s153 + $0x458] sm:$0xff]
        %v319 = vld [vmem:[%s153 + $0x460] sm:$0xff]
        %v320 = vld [vmem:[%s153 + $0x468] sm:$0xff]
        %v321 = vld [vmem:[%s153 + $0x470] sm:$0xff]
        %v322 = vld [vmem:[%s153 + $0x478] sm:$0xff]
        %v323 = vld [vmem:[%s153 + $0x480] sm:$0xff]
        %v324 = vld [vmem:[%s153 + $0x488] sm:$0xff]
        %v325 = vld [vmem:[%s153 + $0x490] sm:$0xff]
        %v326 = vld [vmem:[%s153 + $0x498] sm:$0xff]
        %v327 = vld [vmem:[%s153 + $0x4a0] sm:$0xff]
        %v328 = vld [vmem:[%s153 + $0x4a8] sm:$0xff]
        %v329 = vld [vmem:[%s153 + $0x4b0] sm:$0xff]
        %v330 = vld [vmem:[%s153 + $0x4b8] sm:$0xff]
        %v331 = vld [vmem:[%s153 + $0x4c0] sm:$0xff]
        %v332 = vld [vmem:[%s153 + $0x4c8] sm:$0xff]
        %v333 = vld [vmem:[%s153 + $0x4d0] sm:$0xff]
        %v334 = vld [vmem:[%s153 + $0x4d8] sm:$0xff]
        %v335 = vld [vmem:[%s153 + $0x4e0] sm:$0xff]
        %v336 = vld [vmem:[%s153 + $0x4e8] sm:$0xff]
        %v337 = vld [vmem:[%s153 + $0x4f0] sm:$0xff]
        %v338 = vld [vmem:[%s153 + $0x4f8] sm:$0xff]
        %v339 = vld [vmem:[%s153 + $0x500] sm:$0xff]
        %v340 = vld [vmem:[%s153 + $0x508] sm:$0xff]
        %v341 = vld [vmem:[%s153 + $0x510] sm:$0xff]
        %v342 = vld [vmem:[%s153 + $0x518] sm:$0xff]
        %v343 = vld [vmem:[%s153 + $0x520] sm:$0xff]
        %v344 = vld [vmem:[%s153 + $0x528] sm:$0xff]
        %v345 = vld [vmem:[%s153 + $0x530] sm:$0xff]
        %v346 = vld [vmem:[%s153 + $0x538] sm:$0xff]
        %v347 = vld [vmem:[%s153 + $0x540] sm:$0xff]
        %v348 = vld [vmem:[%s153 + $0x548] sm:$0xff]
        %v349 = vld [vmem:[%s153 + $0x550] sm:$0xff]
        %v350 = vld [vmem:[%s153 + $0x558] sm:$0xff]
        %v351 = vld [vmem:[%s153 + $0x560] sm:$0xff]
        %v352 = vld [vmem:[%s153 + $0x568] sm:$0xff]
        %v353 = vld [vmem:[%s153 + $0x570] sm:$0xff]
        %v354 = vld [vmem:[%s153 + $0x578] sm:$0xff]
        %v355 = vld [vmem:[%s153 + $0x580] sm:$0xff]
        %v356 = vld [vmem:[%s153 + $0x588] sm:$0xff]
        %v357 = vld [vmem:[%s153 + $0x590] sm:$0xff]
        %v358 = vld [vmem:[%s153 + $0x598] sm:$0xff]
        %v359 = vld [vmem:[%s153 + $0x5a0] sm:$0xff]
        %v360 = vld [vmem:[%s153 + $0x5a8] sm:$0xff]
        %v361 = vld [vmem:[%s153 + $0x5b0] sm:$0xff]
        %v362 = vld [vmem:[%s153 + $0x5b8] sm:$0xff]
        %v363 = vld [vmem:[%s153 + $0x5c0] sm:$0xff]
        %v364 = vld [vmem:[%s153 + $0x5c8] sm:$0xff]
        %v365 = vld [vmem:[%s153 + $0x5d0] sm:$0xff]
        %v366 = vld [vmem:[%s153 + $0x5d8] sm:$0xff]
        %v367 = vld [vmem:[%s153 + $0x5e0] sm:$0xff]
        %v368 = vld [vmem:[%s153 + $0x5e8] sm:$0xff]
        %v369 = vld [vmem:[%s153 + $0x5f0] sm:$0xff]
        %v370 = vld [vmem:[%s153 + $0x5f8] sm:$0xff]
        %v371 = vld [vmem:[%s153 + $0x600] sm:$0xff]
        %v372 = vld [vmem:[%s153 + $0x608] sm:$0xff]
        %v373 = vld [vmem:[%s153 + $0x610] sm:$0xff]
        %v374 = vld [vmem:[%s153 + $0x618] sm:$0xff]
        %v375 = vld [vmem:[%s153 + $0x620] sm:$0xff]
        %v376 = vld [vmem:[%s153 + $0x628] sm:$0xff]
        %v377 = vld [vmem:[%s153 + $0x630] sm:$0xff]
        %v378 = vld [vmem:[%s153 + $0x638] sm:$0xff]
        %v379 = vld [vmem:[%s153 + $0x640] sm:$0xff]
        %v380 = vld [vmem:[%s153 + $0x648] sm:$0xff]
        %v381 = vld [vmem:[%s153 + $0x650] sm:$0xff]
        %v382 = vld [vmem:[%s153 + $0x658] sm:$0xff]
        %v383 = vld [vmem:[%s153 + $0x660] sm:$0xff]
        %v384 = vld [vmem:[%s153 + $0x668] sm:$0xff]
        %v385 = vld [vmem:[%s153 + $0x670] sm:$0xff]
        %v386 = vld [vmem:[%s153 + $0x678] sm:$0xff]
        %v387 = vld [vmem:[%s153 + $0x680] sm:$0xff]
        %v388 = vld [vmem:[%s153 + $0x688] sm:$0xff]
        %v389 = vld [vmem:[%s153 + $0x690] sm:$0xff]
        %v390 = vld [vmem:[%s153 + $0x698] sm:$0xff]
        %v391 = vld [vmem:[%s153 + $0x6a0] sm:$0xff]
        %v392 = vld [vmem:[%s153 + $0x6a8] sm:$0xff]
        %v393 = vld [vmem:[%s153 + $0x6b0] sm:$0xff]
        %v394 = vld [vmem:[%s153 + $0x6b8] sm:$0xff]
        %v395 = vld [vmem:[%s153 + $0x6c0] sm:$0xff]
        %v396 = vld [vmem:[%s153 + $0x6c8] sm:$0xff]
        %v397 = vld [vmem:[%s153 + $0x6d0] sm:$0xff]
        %v398 = vld [vmem:[%s153 + $0x6d8] sm:$0xff]
        %v399 = vld [vmem:[%s153 + $0x6e0] sm:$0xff]
        %v400 = vld [vmem:[%s153 + $0x6e8] sm:$0xff]
        %v401 = vld [vmem:[%s153 + $0x6f0] sm:$0xff]
        %v402 = vld [vmem:[%s153 + $0x6f8] sm:$0xff]
        %v403 = vld [vmem:[%s153 + $0x700] sm:$0xff]
        %v404 = vld [vmem:[%s153 + $0x708] sm:$0xff]
        %v405 = vld [vmem:[%s153 + $0x710] sm:$0xff]
        %v406 = vld [vmem:[%s153 + $0x718] sm:$0xff]
        %v407 = vld [vmem:[%s153 + $0x720] sm:$0xff]
        %v408 = vld [vmem:[%s153 + $0x728] sm:$0xff]
        %v409 = vld [vmem:[%s153 + $0x730] sm:$0xff]
        %v410 = vld [vmem:[%s153 + $0x738] sm:$0xff]
        %v411 = vld [vmem:[%s153 + $0x740] sm:$0xff]
        %v412 = vld [vmem:[%s153 + $0x748] sm:$0xff]
        %v413 = vld [vmem:[%s153 + $0x750] sm:$0xff]
        %v414 = vld [vmem:[%s153 + $0x758] sm:$0xff]
        %v415 = vld [vmem:[%s153 + $0x760] sm:$0xff]
        %v416 = vld [vmem:[%s153 + $0x768] sm:$0xff]
        %v417 = vld [vmem:[%s153 + $0x770] sm:$0xff]
        %v418 = vld [vmem:[%s153 + $0x778] sm:$0xff]
        %v419 = vld [vmem:[%s153 + $0x780] sm:$0xff]
        %v420 = vld [vmem:[%s153 + $0x788] sm:$0xff]
        %v421 = vld [vmem:[%s153 + $0x790] sm:$0xff]
        %v422 = vld [vmem:[%s153 + $0x798] sm:$0xff]
        %v423 = vld [vmem:[%s153 + $0x7a0] sm:$0xff]
        %v424 = vld [vmem:[%s153 + $0x7a8] sm:$0xff]
        %v425 = vld [vmem:[%s153 + $0x7b0] sm:$0xff]
        %v426 = vld [vmem:[%s153 + $0x7b8] sm:$0xff]
        %v427 = vld [vmem:[%s153 + $0x7c0] sm:$0xff]
        %v428 = vld [vmem:[%s153 + $0x7c8] sm:$0xff]
        %v429 = vld [vmem:[%s153 + $0x7d0] sm:$0xff]
        %v430 = vld [vmem:[%s153 + $0x7d8] sm:$0xff]
        %v431 = vld [vmem:[%s153 + $0x7e0] sm:$0xff]
        %v432 = vld [vmem:[%s153 + $0x7e8] sm:$0xff]
        %v433 = vld [vmem:[%s153 + $0x7f0] sm:$0xff]
        %v434 = vld [vmem:[%s153 + $0x7f8] sm:$0xff]
        %v435 = vstv %s177
        %v436 = vmul.f32 %v179, %v435
        %v437 = vmul.f32 %v180, %v435
        %v438 = vmul.f32 %v181, %v435
        %v439 = vmul.f32 %v182, %v435
        %v440 = vmul.f32 %v183, %v435
        %v441 = vmul.f32 %v184, %v435
        %v442 = vmul.f32 %v185, %v435
        %v443 = vmul.f32 %v186, %v435
        %v444 = vmul.f32 %v187, %v435
        %v445 = vmul.f32 %v188, %v435
        %v446 = vmul.f32 %v189, %v435
        %v447 = vmul.f32 %v190, %v435
        %v448 = vmul.f32 %v191, %v435
        %v449 = vmul.f32 %v192, %v435
        %v450 = vmul.f32 %v193, %v435
        %v451 = vmul.f32 %v194, %v435
        %v452 = vmul.f32 %v195, %v435
        %v453 = vmul.f32 %v196, %v435
        %v454 = vmul.f32 %v197, %v435
        %v455 = vmul.f32 %v198, %v435
        %v456 = vmul.f32 %v199, %v435
        %v457 = vmul.f32 %v200, %v435
        %v458 = vmul.f32 %v201, %v435
        %v459 = vmul.f32 %v202, %v435
        %v460 = vmul.f32 %v203, %v435
        %v461 = vmul.f32 %v204, %v435
        %v462 = vmul.f32 %v205, %v435
        %v463 = vmul.f32 %v206, %v435
        %v464 = vmul.f32 %v207, %v435
        %v465 = vmul.f32 %v208, %v435
        %v466 = vmul.f32 %v209, %v435
        %v467 = vmul.f32 %v210, %v435
        %v468 = vmul.f32 %v211, %v435
        %v469 = vmul.f32 %v212, %v435
        %v470 = vmul.f32 %v213, %v435
        %v471 = vmul.f32 %v214, %v435
        %v472 = vmul.f32 %v215, %v435
        %v473 = vmul.f32 %v216, %v435
        %v474 = vmul.f32 %v217, %v435
        %v475 = vmul.f32 %v218, %v435
        %v476 = vmul.f32 %v219, %v435
        %v477 = vmul.f32 %v220, %v435
        %v478 = vmul.f32 %v221, %v435
        %v479 = vmul.f32 %v222, %v435
        %v480 = vmul.f32 %v223, %v435
        %v481 = vmul.f32 %v224, %v435
        %v482 = vmul.f32 %v225, %v435
        %v483 = vmul.f32 %v226, %v435
        %v484 = vmul.f32 %v227, %v435
        %v485 = vmul.f32 %v228, %v435
        %v486 = vmul.f32 %v229, %v435
        %v487 = vmul.f32 %v230, %v435
        %v488 = vmul.f32 %v231, %v435
        %v489 = vmul.f32 %v232, %v435
        %v490 = vmul.f32 %v233, %v435
        %v491 = vmul.f32 %v234, %v435
        %v492 = vmul.f32 %v235, %v435
        %v493 = vmul.f32 %v236, %v435
        %v494 = vmul.f32 %v237, %v435
        %v495 = vmul.f32 %v238, %v435
        %v496 = vmul.f32 %v239, %v435
        %v497 = vmul.f32 %v240, %v435
        %v498 = vmul.f32 %v241, %v435
        %v499 = vmul.f32 %v242, %v435
        %v500 = vmul.f32 %v243, %v435
        %v501 = vmul.f32 %v244, %v435
        %v502 = vmul.f32 %v245, %v435
        %v503 = vmul.f32 %v246, %v435
        %v504 = vmul.f32 %v247, %v435
        %v505 = vmul.f32 %v248, %v435
        %v506 = vmul.f32 %v249, %v435
        %v507 = vmul.f32 %v250, %v435
        %v508 = vmul.f32 %v251, %v435
        %v509 = vmul.f32 %v252, %v435
        %v510 = vmul.f32 %v253, %v435
        %v511 = vmul.f32 %v254, %v435
        %v512 = vmul.f32 %v255, %v435
        %v513 = vmul.f32 %v256, %v435
        %v514 = vmul.f32 %v257, %v435
        %v515 = vmul.f32 %v258, %v435
        %v516 = vmul.f32 %v259, %v435
        %v517 = vmul.f32 %v260, %v435
        %v518 = vmul.f32 %v261, %v435
        %v519 = vmul.f32 %v262, %v435
        %v520 = vmul.f32 %v263, %v435
        %v521 = vmul.f32 %v264, %v435
        %v522 = vmul.f32 %v265, %v435
        %v523 = vmul.f32 %v266, %v435
        %v524 = vmul.f32 %v267, %v435
        %v525 = vmul.f32 %v268, %v435
        %v526 = vmul.f32 %v269, %v435
        %v527 = vmul.f32 %v270, %v435
        %v528 = vmul.f32 %v271, %v435
        %v529 = vmul.f32 %v272, %v435
        %v530 = vmul.f32 %v273, %v435
        %v531 = vmul.f32 %v274, %v435
        %v532 = vmul.f32 %v275, %v435
        %v533 = vmul.f32 %v276, %v435
        %v534 = vmul.f32 %v277, %v435
        %v535 = vmul.f32 %v278, %v435
        %v536 = vmul.f32 %v279, %v435
        %v537 = vmul.f32 %v280, %v435
        %v538 = vmul.f32 %v281, %v435
        %v539 = vmul.f32 %v282, %v435
        %v540 = vmul.f32 %v283, %v435
        %v541 = vmul.f32 %v284, %v435
        %v542 = vmul.f32 %v285, %v435
        %v543 = vmul.f32 %v286, %v435
        %v544 = vmul.f32 %v287, %v435
        %v545 = vmul.f32 %v288, %v435
        %v546 = vmul.f32 %v289, %v435
        %v547 = vmul.f32 %v290, %v435
        %v548 = vmul.f32 %v291, %v435
        %v549 = vmul.f32 %v292, %v435
        %v550 = vmul.f32 %v293, %v435
        %v551 = vmul.f32 %v294, %v435
        %v552 = vmul.f32 %v295, %v435
        %v553 = vmul.f32 %v296, %v435
        %v554 = vmul.f32 %v297, %v435
        %v555 = vmul.f32 %v298, %v435
        %v556 = vmul.f32 %v299, %v435
        %v557 = vmul.f32 %v300, %v435
        %v558 = vmul.f32 %v301, %v435
        %v559 = vmul.f32 %v302, %v435
        %v560 = vmul.f32 %v303, %v435
        %v561 = vmul.f32 %v304, %v435
        %v562 = vmul.f32 %v305, %v435
        %v563 = vmul.f32 %v306, %v435
        %v564 = vmul.f32 %v307, %v435
        %v565 = vmul.f32 %v308, %v435
        %v566 = vmul.f32 %v309, %v435
        %v567 = vmul.f32 %v310, %v435
        %v568 = vmul.f32 %v311, %v435
        %v569 = vmul.f32 %v312, %v435
        %v570 = vmul.f32 %v313, %v435
        %v571 = vmul.f32 %v314, %v435
        %v572 = vmul.f32 %v315, %v435
        %v573 = vmul.f32 %v316, %v435
        %v574 = vmul.f32 %v317, %v435
        %v575 = vmul.f32 %v318, %v435
        %v576 = vmul.f32 %v319, %v435
        %v577 = vmul.f32 %v320, %v435
        %v578 = vmul.f32 %v321, %v435
        %v579 = vmul.f32 %v322, %v435
        %v580 = vmul.f32 %v323, %v435
        %v581 = vmul.f32 %v324, %v435
        %v582 = vmul.f32 %v325, %v435
        %v583 = vmul.f32 %v326, %v435
        %v584 = vmul.f32 %v327, %v435
        %v585 = vmul.f32 %v328, %v435
        %v586 = vmul.f32 %v329, %v435
        %v587 = vmul.f32 %v330, %v435
        %v588 = vmul.f32 %v331, %v435
        %v589 = vmul.f32 %v332, %v435
        %v590 = vmul.f32 %v333, %v435
        %v591 = vmul.f32 %v334, %v435
        %v592 = vmul.f32 %v335, %v435
        %v593 = vmul.f32 %v336, %v435
        %v594 = vmul.f32 %v337, %v435
        %v595 = vmul.f32 %v338, %v435
        %v596 = vmul.f32 %v339, %v435
        %v597 = vmul.f32 %v340, %v435
        %v598 = vmul.f32 %v341, %v435
        %v599 = vmul.f32 %v342, %v435
        %v600 = vmul.f32 %v343, %v435
        %v601 = vmul.f32 %v344, %v435
        %v602 = vmul.f32 %v345, %v435
        %v603 = vmul.f32 %v346, %v435
        %v604 = vmul.f32 %v347, %v435
        %v605 = vmul.f32 %v348, %v435
        %v606 = vmul.f32 %v349, %v435
        %v607 = vmul.f32 %v350, %v435
        %v608 = vmul.f32 %v351, %v435
        %v609 = vmul.f32 %v352, %v435
        %v610 = vmul.f32 %v353, %v435
        %v611 = vmul.f32 %v354, %v435
        %v612 = vmul.f32 %v355, %v435
        %v613 = vmul.f32 %v356, %v435
        %v614 = vmul.f32 %v357, %v435
        %v615 = vmul.f32 %v358, %v435
        %v616 = vmul.f32 %v359, %v435
        %v617 = vmul.f32 %v360, %v435
        %v618 = vmul.f32 %v361, %v435
        %v619 = vmul.f32 %v362, %v435
        %v620 = vmul.f32 %v363, %v435
        %v621 = vmul.f32 %v364, %v435
        %v622 = vmul.f32 %v365, %v435
        %v623 = vmul.f32 %v366, %v435
        %v624 = vmul.f32 %v367, %v435
        %v625 = vmul.f32 %v368, %v435
        %v626 = vmul.f32 %v369, %v435
        %v627 = vmul.f32 %v370, %v435
        %v628 = vmul.f32 %v371, %v435
        %v629 = vmul.f32 %v372, %v435
        %v630 = vmul.f32 %v373, %v435
        %v631 = vmul.f32 %v374, %v435
        %v632 = vmul.f32 %v375, %v435
        %v633 = vmul.f32 %v376, %v435
        %v634 = vmul.f32 %v377, %v435
        %v635 = vmul.f32 %v378, %v435
        %v636 = vmul.f32 %v379, %v435
        %v637 = vmul.f32 %v380, %v435
        %v638 = vmul.f32 %v381, %v435
        %v639 = vmul.f32 %v382, %v435
        %v640 = vmul.f32 %v383, %v435
        %v641 = vmul.f32 %v384, %v435
        %v642 = vmul.f32 %v385, %v435
        %v643 = vmul.f32 %v386, %v435
        %v644 = vmul.f32 %v387, %v435
        %v645 = vmul.f32 %v388, %v435
        %v646 = vmul.f32 %v389, %v435
        %v647 = vmul.f32 %v390, %v435
        %v648 = vmul.f32 %v391, %v435
        %v649 = vmul.f32 %v392, %v435
        %v650 = vmul.f32 %v393, %v435
        %v651 = vmul.f32 %v394, %v435
        %v652 = vmul.f32 %v395, %v435
        %v653 = vmul.f32 %v396, %v435
        %v654 = vmul.f32 %v397, %v435
        %v655 = vmul.f32 %v398, %v435
        %v656 = vmul.f32 %v399, %v435
        %v657 = vmul.f32 %v400, %v435
        %v658 = vmul.f32 %v401, %v435
        %v659 = vmul.f32 %v402, %v435
        %v660 = vmul.f32 %v403, %v435
        %v661 = vmul.f32 %v404, %v435
        %v662 = vmul.f32 %v405, %v435
        %v663 = vmul.f32 %v406, %v435
        %v664 = vmul.f32 %v407, %v435
        %v665 = vmul.f32 %v408, %v435
        %v666 = vmul.f32 %v409, %v435
        %v667 = vmul.f32 %v410, %v435
        %v668 = vmul.f32 %v411, %v435
        %v669 = vmul.f32 %v412, %v435
        %v670 = vmul.f32 %v413, %v435
        %v671 = vmul.f32 %v414, %v435
        %v672 = vmul.f32 %v415, %v435
        %v673 = vmul.f32 %v416, %v435
        %v674 = vmul.f32 %v417, %v435
        %v675 = vmul.f32 %v418, %v435
        %v676 = vmul.f32 %v419, %v435
        %v677 = vmul.f32 %v420, %v435
        %v678 = vmul.f32 %v421, %v435
        %v679 = vmul.f32 %v422, %v435
        %v680 = vmul.f32 %v423, %v435
        %v681 = vmul.f32 %v424, %v435
        %v682 = vmul.f32 %v425, %v435
        %v683 = vmul.f32 %v426, %v435
        %v684 = vmul.f32 %v427, %v435
        %v685 = vmul.f32 %v428, %v435
        %v686 = vmul.f32 %v429, %v435
        %v687 = vmul.f32 %v430, %v435
        %v688 = vmul.f32 %v431, %v435
        %v689 = vmul.f32 %v432, %v435
        %v690 = vmul.f32 %v433, %v435
        %v691 = vmul.f32 %v434, %v435
        %v692 = vstv %s178
        %v693 = vadd.f32 %v436, %v692
        %v694 = vadd.f32 %v437, %v692
        %v695 = vadd.f32 %v438, %v692
        %v696 = vadd.f32 %v439, %v692
        %v697 = vadd.f32 %v440, %v692
        %v698 = vadd.f32 %v441, %v692
        %v699 = vadd.f32 %v442, %v692
        %v700 = vadd.f32 %v443, %v692
        %v701 = vadd.f32 %v444, %v692
        %v702 = vadd.f32 %v445, %v692
        %v703 = vadd.f32 %v446, %v692
        %v704 = vadd.f32 %v447, %v692
        %v705 = vadd.f32 %v448, %v692
        %v706 = vadd.f32 %v449, %v692
        %v707 = vadd.f32 %v450, %v692
        %v708 = vadd.f32 %v451, %v692
        %v709 = vadd.f32 %v452, %v692
        %v710 = vadd.f32 %v453, %v692
        %v711 = vadd.f32 %v454, %v692
        %v712 = vadd.f32 %v455, %v692
        %v713 = vadd.f32 %v456, %v692
        %v714 = vadd.f32 %v457, %v692
        %v715 = vadd.f32 %v458, %v692
        %v716 = vadd.f32 %v459, %v692
        %v717 = vadd.f32 %v460, %v692
        %v718 = vadd.f32 %v461, %v692
        %v719 = vadd.f32 %v462, %v692
        %v720 = vadd.f32 %v463, %v692
        %v721 = vadd.f32 %v464, %v692
        %v722 = vadd.f32 %v465, %v692
        %v723 = vadd.f32 %v466, %v692
        %v724 = vadd.f32 %v467, %v692
        %v725 = vadd.f32 %v468, %v692
        %v726 = vadd.f32 %v469, %v692
        %v727 = vadd.f32 %v470, %v692
        %v728 = vadd.f32 %v471, %v692
        %v729 = vadd.f32 %v472, %v692
        %v730 = vadd.f32 %v473, %v692
        %v731 = vadd.f32 %v474, %v692
        %v732 = vadd.f32 %v475, %v692
        %v733 = vadd.f32 %v476, %v692
        %v734 = vadd.f32 %v477, %v692
        %v735 = vadd.f32 %v478, %v692
        %v736 = vadd.f32 %v479, %v692
        %v737 = vadd.f32 %v480, %v692
        %v738 = vadd.f32 %v481, %v692
        %v739 = vadd.f32 %v482, %v692
        %v740 = vadd.f32 %v483, %v692
        %v741 = vadd.f32 %v484, %v692
        %v742 = vadd.f32 %v485, %v692
        %v743 = vadd.f32 %v486, %v692
        %v744 = vadd.f32 %v487, %v692
        %v745 = vadd.f32 %v488, %v692
        %v746 = vadd.f32 %v489, %v692
        %v747 = vadd.f32 %v490, %v692
        %v748 = vadd.f32 %v491, %v692
        %v749 = vadd.f32 %v492, %v692
        %v750 = vadd.f32 %v493, %v692
        %v751 = vadd.f32 %v494, %v692
        %v752 = vadd.f32 %v495, %v692
        %v753 = vadd.f32 %v496, %v692
        %v754 = vadd.f32 %v497, %v692
        %v755 = vadd.f32 %v498, %v692
        %v756 = vadd.f32 %v499, %v692
        %v757 = vadd.f32 %v500, %v692
        %v758 = vadd.f32 %v501, %v692
        %v759 = vadd.f32 %v502, %v692
        %v760 = vadd.f32 %v503, %v692
        %v761 = vadd.f32 %v504, %v692
        %v762 = vadd.f32 %v505, %v692
        %v763 = vadd.f32 %v506, %v692
        %v764 = vadd.f32 %v507, %v692
        %v765 = vadd.f32 %v508, %v692
        %v766 = vadd.f32 %v509, %v692
        %v767 = vadd.f32 %v510, %v692
        %v768 = vadd.f32 %v511, %v692
        %v769 = vadd.f32 %v512, %v692
        %v770 = vadd.f32 %v513, %v692
        %v771 = vadd.f32 %v514, %v692
        %v772 = vadd.f32 %v515, %v692
        %v773 = vadd.f32 %v516, %v692
        %v774 = vadd.f32 %v517, %v692
        %v775 = vadd.f32 %v518, %v692
        %v776 = vadd.f32 %v519, %v692
        %v777 = vadd.f32 %v520, %v692
        %v778 = vadd.f32 %v521, %v692
        %v779 = vadd.f32 %v522, %v692
        %v780 = vadd.f32 %v523, %v692
        %v781 = vadd.f32 %v524, %v692
        %v782 = vadd.f32 %v525, %v692
        %v783 = vadd.f32 %v526, %v692
        %v784 = vadd.f32 %v527, %v692
        %v785 = vadd.f32 %v528, %v692
        %v786 = vadd.f32 %v529, %v692
        %v787 = vadd.f32 %v530, %v692
        %v788 = vadd.f32 %v531, %v692
        %v789 = vadd.f32 %v532, %v692
        %v790 = vadd.f32 %v533, %v692
        %v791 = vadd.f32 %v534, %v692
        %v792 = vadd.f32 %v535, %v692
        %v793 = vadd.f32 %v536, %v692
        %v794 = vadd.f32 %v537, %v692
        %v795 = vadd.f32 %v538, %v692
        %v796 = vadd.f32 %v539, %v692
        %v797 = vadd.f32 %v540, %v692
        %v798 = vadd.f32 %v541, %v692
        %v799 = vadd.f32 %v542, %v692
        %v800 = vadd.f32 %v543, %v692
        %v801 = vadd.f32 %v544, %v692
        %v802 = vadd.f32 %v545, %v692
        %v803 = vadd.f32 %v546, %v692
        %v804 = vadd.f32 %v547, %v692
        %v805 = vadd.f32 %v548, %v692
        %v806 = vadd.f32 %v549, %v692
        %v807 = vadd.f32 %v550, %v692
        %v808 = vadd.f32 %v551, %v692
        %v809 = vadd.f32 %v552, %v692
        %v810 = vadd.f32 %v553, %v692
        %v811 = vadd.f32 %v554, %v692
        %v812 = vadd.f32 %v555, %v692
        %v813 = vadd.f32 %v556, %v692
        %v814 = vadd.f32 %v557, %v692
        %v815 = vadd.f32 %v558, %v692
        %v816 = vadd.f32 %v559, %v692
        %v817 = vadd.f32 %v560, %v692
        %v818 = vadd.f32 %v561, %v692
        %v819 = vadd.f32 %v562, %v692
        %v820 = vadd.f32 %v563, %v692
        %v821 = vadd.f32 %v564, %v692
        %v822 = vadd.f32 %v565, %v692
        %v823 = vadd.f32 %v566, %v692
        %v824 = vadd.f32 %v567, %v692
        %v825 = vadd.f32 %v568, %v692
        %v826 = vadd.f32 %v569, %v692
        %v827 = vadd.f32 %v570, %v692
        %v828 = vadd.f32 %v571, %v692
        %v829 = vadd.f32 %v572, %v692
        %v830 = vadd.f32 %v573, %v692
        %v831 = vadd.f32 %v574, %v692
        %v832 = vadd.f32 %v575, %v692
        %v833 = vadd.f32 %v576, %v692
        %v834 = vadd.f32 %v577, %v692
        %v835 = vadd.f32 %v578, %v692
        %v836 = vadd.f32 %v579, %v692
        %v837 = vadd.f32 %v580, %v692
        %v838 = vadd.f32 %v581, %v692
        %v839 = vadd.f32 %v582, %v692
        %v840 = vadd.f32 %v583, %v692
        %v841 = vadd.f32 %v584, %v692
        %v842 = vadd.f32 %v585, %v692
        %v843 = vadd.f32 %v586, %v692
        %v844 = vadd.f32 %v587, %v692
        %v845 = vadd.f32 %v588, %v692
        %v846 = vadd.f32 %v589, %v692
        %v847 = vadd.f32 %v590, %v692
        %v848 = vadd.f32 %v591, %v692
        %v849 = vadd.f32 %v592, %v692
        %v850 = vadd.f32 %v593, %v692
        %v851 = vadd.f32 %v594, %v692
        %v852 = vadd.f32 %v595, %v692
        %v853 = vadd.f32 %v596, %v692
        %v854 = vadd.f32 %v597, %v692
        %v855 = vadd.f32 %v598, %v692
        %v856 = vadd.f32 %v599, %v692
        %v857 = vadd.f32 %v600, %v692
        %v858 = vadd.f32 %v601, %v692
        %v859 = vadd.f32 %v602, %v692
        %v860 = vadd.f32 %v603, %v692
        %v861 = vadd.f32 %v604, %v692
        %v862 = vadd.f32 %v605, %v692
        %v863 = vadd.f32 %v606, %v692
        %v864 = vadd.f32 %v607, %v692
        %v865 = vadd.f32 %v608, %v692
        %v866 = vadd.f32 %v609, %v692
        %v867 = vadd.f32 %v610, %v692
        %v868 = vadd.f32 %v611, %v692
        %v869 = vadd.f32 %v612, %v692
        %v870 = vadd.f32 %v613, %v692
        %v871 = vadd.f32 %v614, %v692
        %v872 = vadd.f32 %v615, %v692
        %v873 = vadd.f32 %v616, %v692
        %v874 = vadd.f32 %v617, %v692
        %v875 = vadd.f32 %v618, %v692
        %v876 = vadd.f32 %v619, %v692
        %v877 = vadd.f32 %v620, %v692
        %v878 = vadd.f32 %v621, %v692
        %v879 = vadd.f32 %v622, %v692
        %v880 = vadd.f32 %v623, %v692
        %v881 = vadd.f32 %v624, %v692
        %v882 = vadd.f32 %v625, %v692
        %v883 = vadd.f32 %v626, %v692
        %v884 = vadd.f32 %v627, %v692
        %v885 = vadd.f32 %v628, %v692
        %v886 = vadd.f32 %v629, %v692
        %v887 = vadd.f32 %v630, %v692
        %v888 = vadd.f32 %v631, %v692
        %v889 = vadd.f32 %v632, %v692
        %v890 = vadd.f32 %v633, %v692
        %v891 = vadd.f32 %v634, %v692
        %v892 = vadd.f32 %v635, %v692
        %v893 = vadd.f32 %v636, %v692
        %v894 = vadd.f32 %v637, %v692
        %v895 = vadd.f32 %v638, %v692
        %v896 = vadd.f32 %v639, %v692
        %v897 = vadd.f32 %v640, %v692
        %v898 = vadd.f32 %v641, %v692
        %v899 = vadd.f32 %v642, %v692
        %v900 = vadd.f32 %v643, %v692
        %v901 = vadd.f32 %v644, %v692
        %v902 = vadd.f32 %v645, %v692
        %v903 = vadd.f32 %v646, %v692
        %v904 = vadd.f32 %v647, %v692
        %v905 = vadd.f32 %v648, %v692
        %v906 = vadd.f32 %v649, %v692
        %v907 = vadd.f32 %v650, %v692
        %v908 = vadd.f32 %v651, %v692
        %v909 = vadd.f32 %v652, %v692
        %v910 = vadd.f32 %v653, %v692
        %v911 = vadd.f32 %v654, %v692
        %v912 = vadd.f32 %v655, %v692
        %v913 = vadd.f32 %v656, %v692
        %v914 = vadd.f32 %v657, %v692
        %v915 = vadd.f32 %v658, %v692
        %v916 = vadd.f32 %v659, %v692
        %v917 = vadd.f32 %v660, %v692
        %v918 = vadd.f32 %v661, %v692
        %v919 = vadd.f32 %v662, %v692
        %v920 = vadd.f32 %v663, %v692
        %v921 = vadd.f32 %v664, %v692
        %v922 = vadd.f32 %v665, %v692
        %v923 = vadd.f32 %v666, %v692
        %v924 = vadd.f32 %v667, %v692
        %v925 = vadd.f32 %v668, %v692
        %v926 = vadd.f32 %v669, %v692
        %v927 = vadd.f32 %v670, %v692
        %v928 = vadd.f32 %v671, %v692
        %v929 = vadd.f32 %v672, %v692
        %v930 = vadd.f32 %v673, %v692
        %v931 = vadd.f32 %v674, %v692
        %v932 = vadd.f32 %v675, %v692
        %v933 = vadd.f32 %v676, %v692
        %v934 = vadd.f32 %v677, %v692
        %v935 = vadd.f32 %v678, %v692
        %v936 = vadd.f32 %v679, %v692
        %v937 = vadd.f32 %v680, %v692
        %v938 = vadd.f32 %v681, %v692
        %v939 = vadd.f32 %v682, %v692
        %v940 = vadd.f32 %v683, %v692
        %v941 = vadd.f32 %v684, %v692
        %v942 = vadd.f32 %v685, %v692
        %v943 = vadd.f32 %v686, %v692
        %v944 = vadd.f32 %v687, %v692
        %v945 = vadd.f32 %v688, %v692
        %v946 = vadd.f32 %v689, %v692
        %v947 = vadd.f32 %v690, %v692
        %v948 = vadd.f32 %v691, %v692
        %949 = vst [vmem:[%s174] sm:$0xff] %v693
        %950 = vst [vmem:[%s174 + $0x8] sm:$0xff] %v694
        %951 = vst [vmem:[%s174 + $0x10] sm:$0xff] %v695
        %952 = vst [vmem:[%s174 + $0x18] sm:$0xff] %v696
        %953 = vst [vmem:[%s174 + $0x20] sm:$0xff] %v697
        %954 = vst [vmem:[%s174 + $0x28] sm:$0xff] %v698
        %955 = vst [vmem:[%s174 + $0x30] sm:$0xff] %v699
        %956 = vst [vmem:[%s174 + $0x38] sm:$0xff] %v700
        %957 = vst [vmem:[%s174 + $0x40] sm:$0xff] %v701
        %958 = vst [vmem:[%s174 + $0x48] sm:$0xff] %v702
        %959 = vst [vmem:[%s174 + $0x50] sm:$0xff] %v703
        %960 = vst [vmem:[%s174 + $0x58] sm:$0xff] %v704
        %961 = vst [vmem:[%s174 + $0x60] sm:$0xff] %v705
        %962 = vst [vmem:[%s174 + $0x68] sm:$0xff] %v706
        %963 = vst [vmem:[%s174 + $0x70] sm:$0xff] %v707
        %964 = vst [vmem:[%s174 + $0x78] sm:$0xff] %v708
        %965 = vst [vmem:[%s174 + $0x80] sm:$0xff] %v709
        %966 = vst [vmem:[%s174 + $0x88] sm:$0xff] %v710
        %967 = vst [vmem:[%s174 + $0x90] sm:$0xff] %v711
        %968 = vst [vmem:[%s174 + $0x98] sm:$0xff] %v712
        %969 = vst [vmem:[%s174 + $0xa0] sm:$0xff] %v713
        %970 = vst [vmem:[%s174 + $0xa8] sm:$0xff] %v714
        %971 = vst [vmem:[%s174 + $0xb0] sm:$0xff] %v715
        %972 = vst [vmem:[%s174 + $0xb8] sm:$0xff] %v716
        %973 = vst [vmem:[%s174 + $0xc0] sm:$0xff] %v717
        %974 = vst [vmem:[%s174 + $0xc8] sm:$0xff] %v718
        %975 = vst [vmem:[%s174 + $0xd0] sm:$0xff] %v719
        %976 = vst [vmem:[%s174 + $0xd8] sm:$0xff] %v720
        %977 = vst [vmem:[%s174 + $0xe0] sm:$0xff] %v721
        %978 = vst [vmem:[%s174 + $0xe8] sm:$0xff] %v722
        %979 = vst [vmem:[%s174 + $0xf0] sm:$0xff] %v723
        %980 = vst [vmem:[%s174 + $0xf8] sm:$0xff] %v724
        %981 = vst [vmem:[%s174 + $0x100] sm:$0xff] %v725
        %982 = vst [vmem:[%s174 + $0x108] sm:$0xff] %v726
        %983 = vst [vmem:[%s174 + $0x110] sm:$0xff] %v727
        %984 = vst [vmem:[%s174 + $0x118] sm:$0xff] %v728
        %985 = vst [vmem:[%s174 + $0x120] sm:$0xff] %v729
        %986 = vst [vmem:[%s174 + $0x128] sm:$0xff] %v730
        %987 = vst [vmem:[%s174 + $0x130] sm:$0xff] %v731
        %988 = vst [vmem:[%s174 + $0x138] sm:$0xff] %v732
        %989 = vst [vmem:[%s174 + $0x140] sm:$0xff] %v733
        %990 = vst [vmem:[%s174 + $0x148] sm:$0xff] %v734
        %991 = vst [vmem:[%s174 + $0x150] sm:$0xff] %v735
        %992 = vst [vmem:[%s174 + $0x158] sm:$0xff] %v736
        %993 = vst [vmem:[%s174 + $0x160] sm:$0xff] %v737
        %994 = vst [vmem:[%s174 + $0x168] sm:$0xff] %v738
        %995 = vst [vmem:[%s174 + $0x170] sm:$0xff] %v739
        %996 = vst [vmem:[%s174 + $0x178] sm:$0xff] %v740
        %997 = vst [vmem:[%s174 + $0x180] sm:$0xff] %v741
        %998 = vst [vmem:[%s174 + $0x188] sm:$0xff] %v742
        %999 = vst [vmem:[%s174 + $0x190] sm:$0xff] %v743
        %1000 = vst [vmem:[%s174 + $0x198] sm:$0xff] %v744
        %1001 = vst [vmem:[%s174 + $0x1a0] sm:$0xff] %v745
        %1002 = vst [vmem:[%s174 + $0x1a8] sm:$0xff] %v746
        %1003 = vst [vmem:[%s174 + $0x1b0] sm:$0xff] %v747
        %1004 = vst [vmem:[%s174 + $0x1b8] sm:$0xff] %v748
        %1005 = vst [vmem:[%s174 + $0x1c0] sm:$0xff] %v749
        %1006 = vst [vmem:[%s174 + $0x1c8] sm:$0xff] %v750
        %1007 = vst [vmem:[%s174 + $0x1d0] sm:$0xff] %v751
        %1008 = vst [vmem:[%s174 + $0x1d8] sm:$0xff] %v752
        %1009 = vst [vmem:[%s174 + $0x1e0] sm:$0xff] %v753
        %1010 = vst [vmem:[%s174 + $0x1e8] sm:$0xff] %v754
        %1011 = vst [vmem:[%s174 + $0x1f0] sm:$0xff] %v755
        %1012 = vst [vmem:[%s174 + $0x1f8] sm:$0xff] %v756
        %1013 = vst [vmem:[%s174 + $0x200] sm:$0xff] %v757
        %1014 = vst [vmem:[%s174 + $0x208] sm:$0xff] %v758
        %1015 = vst [vmem:[%s174 + $0x210] sm:$0xff] %v759
        %1016 = vst [vmem:[%s174 + $0x218] sm:$0xff] %v760
        %1017 = vst [vmem:[%s174 + $0x220] sm:$0xff] %v761
        %1018 = vst [vmem:[%s174 + $0x228] sm:$0xff] %v762
        %1019 = vst [vmem:[%s174 + $0x230] sm:$0xff] %v763
        %1020 = vst [vmem:[%s174 + $0x238] sm:$0xff] %v764
        %1021 = vst [vmem:[%s174 + $0x240] sm:$0xff] %v765
        %1022 = vst [vmem:[%s174 + $0x248] sm:$0xff] %v766
        %1023 = vst [vmem:[%s174 + $0x250] sm:$0xff] %v767
        %1024 = vst [vmem:[%s174 + $0x258] sm:$0xff] %v768
        %1025 = vst [vmem:[%s174 + $0x260] sm:$0xff] %v769
        %1026 = vst [vmem:[%s174 + $0x268] sm:$0xff] %v770
        %1027 = vst [vmem:[%s174 + $0x270] sm:$0xff] %v771
        %1028 = vst [vmem:[%s174 + $0x278] sm:$0xff] %v772
        %1029 = vst [vmem:[%s174 + $0x280] sm:$0xff] %v773
        %1030 = vst [vmem:[%s174 + $0x288] sm:$0xff] %v774
        %1031 = vst [vmem:[%s174 + $0x290] sm:$0xff] %v775
        %1032 = vst [vmem:[%s174 + $0x298] sm:$0xff] %v776
        %1033 = vst [vmem:[%s174 + $0x2a0] sm:$0xff] %v777
        %1034 = vst [vmem:[%s174 + $0x2a8] sm:$0xff] %v778
        %1035 = vst [vmem:[%s174 + $0x2b0] sm:$0xff] %v779
        %1036 = vst [vmem:[%s174 + $0x2b8] sm:$0xff] %v780
        %1037 = vst [vmem:[%s174 + $0x2c0] sm:$0xff] %v781
        %1038 = vst [vmem:[%s174 + $0x2c8] sm:$0xff] %v782
        %1039 = vst [vmem:[%s174 + $0x2d0] sm:$0xff] %v783
        %1040 = vst [vmem:[%s174 + $0x2d8] sm:$0xff] %v784
        %1041 = vst [vmem:[%s174 + $0x2e0] sm:$0xff] %v785
        %1042 = vst [vmem:[%s174 + $0x2e8] sm:$0xff] %v786
        %1043 = vst [vmem:[%s174 + $0x2f0] sm:$0xff] %v787
        %1044 = vst [vmem:[%s174 + $0x2f8] sm:$0xff] %v788
        %1045 = vst [vmem:[%s174 + $0x300] sm:$0xff] %v789
        %1046 = vst [vmem:[%s174 + $0x308] sm:$0xff] %v790
        %1047 = vst [vmem:[%s174 + $0x310] sm:$0xff] %v791
        %1048 = vst [vmem:[%s174 + $0x318] sm:$0xff] %v792
        %1049 = vst [vmem:[%s174 + $0x320] sm:$0xff] %v793
        %1050 = vst [vmem:[%s174 + $0x328] sm:$0xff] %v794
        %1051 = vst [vmem:[%s174 + $0x330] sm:$0xff] %v795
        %1052 = vst [vmem:[%s174 + $0x338] sm:$0xff] %v796
        %1053 = vst [vmem:[%s174 + $0x340] sm:$0xff] %v797
        %1054 = vst [vmem:[%s174 + $0x348] sm:$0xff] %v798
        %1055 = vst [vmem:[%s174 + $0x350] sm:$0xff] %v799
        %1056 = vst [vmem:[%s174 + $0x358] sm:$0xff] %v800
        %1057 = vst [vmem:[%s174 + $0x360] sm:$0xff] %v801
        %1058 = vst [vmem:[%s174 + $0x368] sm:$0xff] %v802
        %1059 = vst [vmem:[%s174 + $0x370] sm:$0xff] %v803
        %1060 = vst [vmem:[%s174 + $0x378] sm:$0xff] %v804
        %1061 = vst [vmem:[%s174 + $0x380] sm:$0xff] %v805
        %1062 = vst [vmem:[%s174 + $0x388] sm:$0xff] %v806
        %1063 = vst [vmem:[%s174 + $0x390] sm:$0xff] %v807
        %1064 = vst [vmem:[%s174 + $0x398] sm:$0xff] %v808
        %1065 = vst [vmem:[%s174 + $0x3a0] sm:$0xff] %v809
        %1066 = vst [vmem:[%s174 + $0x3a8] sm:$0xff] %v810
        %1067 = vst [vmem:[%s174 + $0x3b0] sm:$0xff] %v811
        %1068 = vst [vmem:[%s174 + $0x3b8] sm:$0xff] %v812
        %1069 = vst [vmem:[%s174 + $0x3c0] sm:$0xff] %v813
        %1070 = vst [vmem:[%s174 + $0x3c8] sm:$0xff] %v814
        %1071 = vst [vmem:[%s174 + $0x3d0] sm:$0xff] %v815
        %1072 = vst [vmem:[%s174 + $0x3d8] sm:$0xff] %v816
        %1073 = vst [vmem:[%s174 + $0x3e0] sm:$0xff] %v817
        %1074 = vst [vmem:[%s174 + $0x3e8] sm:$0xff] %v818
        %1075 = vst [vmem:[%s174 + $0x3f0] sm:$0xff] %v819
        %1076 = vst [vmem:[%s174 + $0x3f8] sm:$0xff] %v820
        %1077 = vst [vmem:[%s174 + $0x400] sm:$0xff] %v821
        %1078 = vst [vmem:[%s174 + $0x408] sm:$0xff] %v822
        %1079 = vst [vmem:[%s174 + $0x410] sm:$0xff] %v823
        %1080 = vst [vmem:[%s174 + $0x418] sm:$0xff] %v824
        %1081 = vst [vmem:[%s174 + $0x420] sm:$0xff] %v825
        %1082 = vst [vmem:[%s174 + $0x428] sm:$0xff] %v826
        %1083 = vst [vmem:[%s174 + $0x430] sm:$0xff] %v827
        %1084 = vst [vmem:[%s174 + $0x438] sm:$0xff] %v828
        %1085 = vst [vmem:[%s174 + $0x440] sm:$0xff] %v829
        %1086 = vst [vmem:[%s174 + $0x448] sm:$0xff] %v830
        %1087 = vst [vmem:[%s174 + $0x450] sm:$0xff] %v831
        %1088 = vst [vmem:[%s174 + $0x458] sm:$0xff] %v832
        %1089 = vst [vmem:[%s174 + $0x460] sm:$0xff] %v833
        %1090 = vst [vmem:[%s174 + $0x468] sm:$0xff] %v834
        %1091 = vst [vmem:[%s174 + $0x470] sm:$0xff] %v835
        %1092 = vst [vmem:[%s174 + $0x478] sm:$0xff] %v836
        %1093 = vst [vmem:[%s174 + $0x480] sm:$0xff] %v837
        %1094 = vst [vmem:[%s174 + $0x488] sm:$0xff] %v838
        %1095 = vst [vmem:[%s174 + $0x490] sm:$0xff] %v839
        %1096 = vst [vmem:[%s174 + $0x498] sm:$0xff] %v840
        %1097 = vst [vmem:[%s174 + $0x4a0] sm:$0xff] %v841
        %1098 = vst [vmem:[%s174 + $0x4a8] sm:$0xff] %v842
        %1099 = vst [vmem:[%s174 + $0x4b0] sm:$0xff] %v843
        %1100 = vst [vmem:[%s174 + $0x4b8] sm:$0xff] %v844
        %1101 = vst [vmem:[%s174 + $0x4c0] sm:$0xff] %v845
        %1102 = vst [vmem:[%s174 + $0x4c8] sm:$0xff] %v846
        %1103 = vst [vmem:[%s174 + $0x4d0] sm:$0xff] %v847
        %1104 = vst [vmem:[%s174 + $0x4d8] sm:$0xff] %v848
        %1105 = vst [vmem:[%s174 + $0x4e0] sm:$0xff] %v849
        %1106 = vst [vmem:[%s174 + $0x4e8] sm:$0xff] %v850
        %1107 = vst [vmem:[%s174 + $0x4f0] sm:$0xff] %v851
        %1108 = vst [vmem:[%s174 + $0x4f8] sm:$0xff] %v852
        %1109 = vst [vmem:[%s174 + $0x500] sm:$0xff] %v853
        %1110 = vst [vmem:[%s174 + $0x508] sm:$0xff] %v854
        %1111 = vst [vmem:[%s174 + $0x510] sm:$0xff] %v855
        %1112 = vst [vmem:[%s174 + $0x518] sm:$0xff] %v856
        %1113 = vst [vmem:[%s174 + $0x520] sm:$0xff] %v857
        %1114 = vst [vmem:[%s174 + $0x528] sm:$0xff] %v858
        %1115 = vst [vmem:[%s174 + $0x530] sm:$0xff] %v859
        %1116 = vst [vmem:[%s174 + $0x538] sm:$0xff] %v860
        %1117 = vst [vmem:[%s174 + $0x540] sm:$0xff] %v861
        %1118 = vst [vmem:[%s174 + $0x548] sm:$0xff] %v862
        %1119 = vst [vmem:[%s174 + $0x550] sm:$0xff] %v863
        %1120 = vst [vmem:[%s174 + $0x558] sm:$0xff] %v864
        %1121 = vst [vmem:[%s174 + $0x560] sm:$0xff] %v865
        %1122 = vst [vmem:[%s174 + $0x568] sm:$0xff] %v866
        %1123 = vst [vmem:[%s174 + $0x570] sm:$0xff] %v867
        %1124 = vst [vmem:[%s174 + $0x578] sm:$0xff] %v868
        %1125 = vst [vmem:[%s174 + $0x580] sm:$0xff] %v869
        %1126 = vst [vmem:[%s174 + $0x588] sm:$0xff] %v870
        %1127 = vst [vmem:[%s174 + $0x590] sm:$0xff] %v871
        %1128 = vst [vmem:[%s174 + $0x598] sm:$0xff] %v872
        %1129 = vst [vmem:[%s174 + $0x5a0] sm:$0xff] %v873
        %1130 = vst [vmem:[%s174 + $0x5a8] sm:$0xff] %v874
        %1131 = vst [vmem:[%s174 + $0x5b0] sm:$0xff] %v875
        %1132 = vst [vmem:[%s174 + $0x5b8] sm:$0xff] %v876
        %1133 = vst [vmem:[%s174 + $0x5c0] sm:$0xff] %v877
        %1134 = vst [vmem:[%s174 + $0x5c8] sm:$0xff] %v878
        %1135 = vst [vmem:[%s174 + $0x5d0] sm:$0xff] %v879
        %1136 = vst [vmem:[%s174 + $0x5d8] sm:$0xff] %v880
        %1137 = vst [vmem:[%s174 + $0x5e0] sm:$0xff] %v881
        %1138 = vst [vmem:[%s174 + $0x5e8] sm:$0xff] %v882
        %1139 = vst [vmem:[%s174 + $0x5f0] sm:$0xff] %v883
        %1140 = vst [vmem:[%s174 + $0x5f8] sm:$0xff] %v884
        %1141 = vst [vmem:[%s174 + $0x600] sm:$0xff] %v885
        %1142 = vst [vmem:[%s174 + $0x608] sm:$0xff] %v886
        %1143 = vst [vmem:[%s174 + $0x610] sm:$0xff] %v887
        %1144 = vst [vmem:[%s174 + $0x618] sm:$0xff] %v888
        %1145 = vst [vmem:[%s174 + $0x620] sm:$0xff] %v889
        %1146 = vst [vmem:[%s174 + $0x628] sm:$0xff] %v890
        %1147 = vst [vmem:[%s174 + $0x630] sm:$0xff] %v891
        %1148 = vst [vmem:[%s174 + $0x638] sm:$0xff] %v892
        %1149 = vst [vmem:[%s174 + $0x640] sm:$0xff] %v893
        %1150 = vst [vmem:[%s174 + $0x648] sm:$0xff] %v894
        %1151 = vst [vmem:[%s174 + $0x650] sm:$0xff] %v895
        %1152 = vst [vmem:[%s174 + $0x658] sm:$0xff] %v896
        %1153 = vst [vmem:[%s174 + $0x660] sm:$0xff] %v897
        %1154 = vst [vmem:[%s174 + $0x668] sm:$0xff] %v898
        %1155 = vst [vmem:[%s174 + $0x670] sm:$0xff] %v899
        %1156 = vst [vmem:[%s174 + $0x678] sm:$0xff] %v900
        %1157 = vst [vmem:[%s174 + $0x680] sm:$0xff] %v901
        %1158 = vst [vmem:[%s174 + $0x688] sm:$0xff] %v902
        %1159 = vst [vmem:[%s174 + $0x690] sm:$0xff] %v903
        %1160 = vst [vmem:[%s174 + $0x698] sm:$0xff] %v904
        %1161 = vst [vmem:[%s174 + $0x6a0] sm:$0xff] %v905
        %1162 = vst [vmem:[%s174 + $0x6a8] sm:$0xff] %v906
        %1163 = vst [vmem:[%s174 + $0x6b0] sm:$0xff] %v907
        %1164 = vst [vmem:[%s174 + $0x6b8] sm:$0xff] %v908
        %1165 = vst [vmem:[%s174 + $0x6c0] sm:$0xff] %v909
        %1166 = vst [vmem:[%s174 + $0x6c8] sm:$0xff] %v910
        %1167 = vst [vmem:[%s174 + $0x6d0] sm:$0xff] %v911
        %1168 = vst [vmem:[%s174 + $0x6d8] sm:$0xff] %v912
        %1169 = vst [vmem:[%s174 + $0x6e0] sm:$0xff] %v913
        %1170 = vst [vmem:[%s174 + $0x6e8] sm:$0xff] %v914
        %1171 = vst [vmem:[%s174 + $0x6f0] sm:$0xff] %v915
        %1172 = vst [vmem:[%s174 + $0x6f8] sm:$0xff] %v916
        %1173 = vst [vmem:[%s174 + $0x700] sm:$0xff] %v917
        %1174 = vst [vmem:[%s174 + $0x708] sm:$0xff] %v918
        %1175 = vst [vmem:[%s174 + $0x710] sm:$0xff] %v919
        %1176 = vst [vmem:[%s174 + $0x718] sm:$0xff] %v920
        %1177 = vst [vmem:[%s174 + $0x720] sm:$0xff] %v921
        %1178 = vst [vmem:[%s174 + $0x728] sm:$0xff] %v922
        %1179 = vst [vmem:[%s174 + $0x730] sm:$0xff] %v923
        %1180 = vst [vmem:[%s174 + $0x738] sm:$0xff] %v924
        %1181 = vst [vmem:[%s174 + $0x740] sm:$0xff] %v925
        %1182 = vst [vmem:[%s174 + $0x748] sm:$0xff] %v926
        %1183 = vst [vmem:[%s174 + $0x750] sm:$0xff] %v927
        %1184 = vst [vmem:[%s174 + $0x758] sm:$0xff] %v928
        %1185 = vst [vmem:[%s174 + $0x760] sm:$0xff] %v929
        %1186 = vst [vmem:[%s174 + $0x768] sm:$0xff] %v930
        %1187 = vst [vmem:[%s174 + $0x770] sm:$0xff] %v931
        %1188 = vst [vmem:[%s174 + $0x778] sm:$0xff] %v932
        %1189 = vst [vmem:[%s174 + $0x780] sm:$0xff] %v933
        %1190 = vst [vmem:[%s174 + $0x788] sm:$0xff] %v934
        %1191 = vst [vmem:[%s174 + $0x790] sm:$0xff] %v935
        %1192 = vst [vmem:[%s174 + $0x798] sm:$0xff] %v936
        %1193 = vst [vmem:[%s174 + $0x7a0] sm:$0xff] %v937
        %1194 = vst [vmem:[%s174 + $0x7a8] sm:$0xff] %v938
        %1195 = vst [vmem:[%s174 + $0x7b0] sm:$0xff] %v939
        %1196 = vst [vmem:[%s174 + $0x7b8] sm:$0xff] %v940
        %1197 = vst [vmem:[%s174 + $0x7c0] sm:$0xff] %v941
        %1198 = vst [vmem:[%s174 + $0x7c8] sm:$0xff] %v942
        %1199 = vst [vmem:[%s174 + $0x7d0] sm:$0xff] %v943
        %1200 = vst [vmem:[%s174 + $0x7d8] sm:$0xff] %v944
        %1201 = vst [vmem:[%s174 + $0x7e0] sm:$0xff] %v945
        %1202 = vst [vmem:[%s174 + $0x7e8] sm:$0xff] %v946
        %1203 = vst [vmem:[%s174 + $0x7f0] sm:$0xff] %v947
        %1204 = vst [vmem:[%s174 + $0x7f8] sm:$0xff] %v948
        %s1205 = sand.u32 %s75, 1
        %s1206 = scalar_lea.sflag [#allocation4], %s1205
        %s1207 = sand.u32 %s75, 1
        %s1208 = smul.addr %s1207, 2048
        %s1209 = scalar_lea.vmem [#allocation7], %s1208
        // Predicated region
        $region37: #{tpu_custom_call.1} parent=27 // pred_check
          %p1210 = pneg %p85
        $region38: #{tpu_custom_call.1} parent=27 // pred_check_branch
          %1212 = sbr.rel (%p1210) target = $region40
        $region39: #{tpu_custom_call.1} parent=27 // pred_region
          %s1213 = smul.u32 8, %s20
          %s1215 = ssub.s32 32768, 32768
          %1216 = vsyncadd %s1206, %s1215
          %s1217 = smul.addr %s1213, 32
          %s1218 = smul.addr %s1217, 128
          %s1219 = scalar_lea.hbm %s2, %s1218
          %s1220 = sshll.u32 %s1209, 4
          %s1221 = int_to_ptr.vmem [resolvable:$true] %s1220
          %1226 = dma.vmem_to_hbm [thread:$0]  %s1221, 32768, %s1219, %s1206, 4096, 4096, 256
        $region40: #{tpu_custom_call.1} parent=27 // pred_fallthru
          _
      $region28: #{tpu_custom_call.1} parent=5 // pred_fallthru
        _
      %p1227 = scmp.le.s32.totalorder 2, %s15
      // Predicated region
      $region41: #{tpu_custom_call.1} parent=5 // pred_check
        %p1228 = pneg %p1227
      $region42: #{tpu_custom_call.1} parent=5 // pred_check_branch
        %1230 = sbr.rel (%p1228) target = $region44
      $region43: #{tpu_custom_call.1} parent=5 // pred_region
        %s1231 = ssub.s32 %s15, 2
        // Predicated region
        $region45: #{tpu_custom_call.1} parent=43 // pred_check
          %p1232 = pneg %p91
        $region46: #{tpu_custom_call.1} parent=43 // pred_check_branch
          %1234 = sbr.rel (%p1232) target = $region48
        $region47: #{tpu_custom_call.1} parent=43 // pred_region
          %s1235 = sand.u32 %s76, 1
          %s1236 = scalar_lea.sflag [#allocation4], %s1235
          %s1237 = sand.u32 %s76, 1
          %s1238 = smul.addr %s1237, 2048
          %s1239 = scalar_lea.vmem [#allocation7], %s1238
          %1240 = dma.done %s1236, 32768
        $region48: #{tpu_custom_call.1} parent=43 // pred_fallthru
          _
      $region44: #{tpu_custom_call.1} parent=5 // pred_fallthru
        _
    $region6: #{tpu_custom_call.1} parent=1 // loop_footer
      %s19 = sadd.s32 1, %s15
    $region7: #{tpu_custom_call.1} parent=1 // loop_footer_branch
      %14 = sbr.rel target = $region3
    $region8: #{tpu_custom_call.1} parent=1 // loop_exit
      _
    %1241 = vsyncpa [#allocation3], 1
    %s1242 = scalar_lea.sflag [#allocation3], 1
    %1243 = vsyncpa %s1242, 1
    %1244 = vsyncpa [#allocation4], 1
    %s1245 = scalar_lea.sflag [#allocation4], 1
    %1246 = vsyncpa %s1245, 1
    %1247 = vsyncpa [#allocation5], 1
    %s1248 = scalar_lea.sflag [#allocation5], 1
    %1249 = vsyncpa %s1248, 1

</llo_original>
